<compile_context>
chip_gen: v6e
topology: v6e:2x2x1
jax: 0.10.0
libtpu: 0.0.40
codegen_flags: <defaults>
</compile_context>

<pallas_src>
import functools
import math

import jax
import jax.numpy as jnp
from jax import lax
from jax.experimental import pallas as pl
from jax.experimental.pallas import tpu as pltpu


def _round_up(v, m):
    return (v + m - 1) // m * m


# ------------------------------------------------------------------ kernel 1
def _xw_scale_kernel(x_ref, theta_ref, dinv_ref, out_ref):
    # One (TM, C_pad) row block of  d^-1/2 * (X @ Theta).  bf16 MXU, f32 acc.
    xw = jnp.dot(x_ref[...], theta_ref[...], preferred_element_type=jnp.float32)
    out_ref[...] = (dinv_ref[...] * xw).astype(out_ref.dtype)


# ------------------------------------------------------------------ kernel 2
def _agg_kernel(a_ref, xw_ref, dinv_ref, out_ref, acc_ref, *, tm, resident):
    # out[i-block] = d_i * sum_k  A_hat[i-block, k-block] @ xw_scaled[k-block]
    # (self-loop already folded into A_hat's diagonal in the wrapper)
    k = pl.program_id(1)

    @pl.when(k == 0)
    def _():
        acc_ref[...] = jnp.zeros_like(acc_ref)

    if resident:
        # xw_scaled is fully VMEM-resident; slice the k-block in place.
        start = pl.multiple_of(k * tm, tm)
        xw_blk = xw_ref[pl.ds(start, tm), :]
    else:
        xw_blk = xw_ref[...]

    # bf16 x bf16 -> f32 accumulate on the MXU.
    acc_ref[...] += jnp.dot(a_ref[...], xw_blk,
                            preferred_element_type=jnp.float32)

    @pl.when(k == pl.num_programs(1) - 1)
    def _():
        out_ref[...] = (dinv_ref[...] * acc_ref[...]).astype(out_ref.dtype)


def _agg_vmem_bytes(tm, n_pad, c_pad, resident):
    a_buf = 2 * tm * tm * 2                                   # A tiles, bf16, 2x buffered
    xw_buf = (2 * n_pad * c_pad * 2) if resident else (2 * tm * c_pad * 2)
    dinv_buf = 2 * tm * 128 * 4                               # (tm, 1) f32, lane-padded
    out_buf = 2 * tm * c_pad * 4
    acc_buf = tm * c_pad * 4
    return a_buf + xw_buf + dinv_buf + out_buf + acc_buf


def gcn_conv(x, edge_index, theta, *, tile=1024):
    """GCNConv forward.  x: (N, C_in) f32, edge_index: (2, E) int32,
    theta: (C_in, C_out) f32  ->  (N, C_out) f32."""
    n, c_in = x.shape
    c_out = theta.shape[1]
    c_pad = _round_up(c_out, 128)          # lane-dense output / full MXU width

    # ---- per-core VMEM budget (v5e/v6e: 128 MiB physical, v7x: 64 MiB/TC) --
    try:
        phys_vmem = pltpu.get_tpu_info().vmem_capacity_bytes
    except Exception:
        phys_vmem = 64 << 20               # conservative fallback
    budget = min(phys_vmem // 2, 48 << 20)

    # ---- pick the largest A tile (multiple of 128) fitting the budget ------
    tm = min(_round_up(tile, 128), _round_up(n, 128))
    while True:
        n_pad = _round_up(n, tm)
        resident = _agg_vmem_bytes(tm, n_pad, c_pad, True) <= budget
        if resident or _agg_vmem_bytes(tm, n_pad, c_pad, False) <= budget or tm == 128:
            break
        tm = max(128, (tm // 2) // 128 * 128)
    # Prefer >= 2 i-tiles so the "parallel" axis can shard across both
    # TensorCores on v7x (halving tm is cheaper than idling a core).
    if n_pad // tm == 1 and tm >= 256 and tm % 256 == 0:
        tm //= 2
        n_pad = _round_up(n, tm)
        resident = _agg_vmem_bytes(tm, n_pad, c_pad, True) <= budget
    n_tiles = n_pad // tm

    # ---- JAX glue: data-dependent adjacency scatter + degrees --------------
    # Build A_hat = A + I directly in bf16 (0/1/2 exact); exact duplicate-edge
    # semantics of the reference .set() are preserved (set then +1 on diag).
    a_hat = jnp.zeros((n_pad, n_pad), jnp.bfloat16).at[
        edge_index[0], edge_index[1]].set(1.0)
    diag = jnp.arange(n_pad)
    a_hat = a_hat.at[diag, diag].add(1.0)
    # f32-accumulated degrees (exact even for degree > 256), deg >= 1.
    deg = jnp.sum(a_hat, axis=-1, dtype=jnp.float32, keepdims=True)
    d_inv_sqrt = lax.rsqrt(deg)                               # (n_pad, 1) f32

    x_bf = jnp.pad(x, ((0, n_pad - n), (0, 0))).astype(jnp.bfloat16)
    theta_bf = jnp.pad(theta, ((0, 0), (0, c_pad - c_out))).astype(jnp.bfloat16)

    # ---- Kernel 1: xw_scaled = d^-1/2 * (X @ Theta), bf16, lane-dense ------
    xw_scaled = pl.pallas_call(
        _xw_scale_kernel,
        out_shape=jax.ShapeDtypeStruct((n_pad, c_pad), jnp.bfloat16),
        grid_spec=pltpu.PrefetchScalarGridSpec(
            num_scalar_prefetch=0,
            grid=(n_tiles,),
            in_specs=[
                pl.BlockSpec((tm, c_in), lambda i: (i, 0)),
                pl.BlockSpec((c_in, c_pad), lambda i: (0, 0)),
                pl.BlockSpec((tm, 1), lambda i: (i, 0)),
            ],
            out_specs=pl.BlockSpec((tm, c_pad), lambda i: (i, 0)),
        ),
        compiler_params=pltpu.CompilerParams(
            dimension_semantics=("parallel",)),
    )(x_bf, theta_bf, d_inv_sqrt)

    # ---- Kernel 2: tiled aggregation  d ⊙ (A_hat @ xw_scaled) --------------
    if resident:
        xw_spec = pl.BlockSpec((n_pad, c_pad), lambda i, k: (0, 0))
        xw_read_bytes = n_pad * c_pad * 2
    else:
        xw_spec = pl.BlockSpec((tm, c_pad), lambda i, k: (k, 0))
        xw_read_bytes = n_tiles * n_pad * c_pad * 2           # re-read per i-tile

    est_vmem = _agg_vmem_bytes(tm, n_pad, c_pad, resident)
    vmem_limit = int(min(max(est_vmem + (16 << 20), 32 << 20),
                         phys_vmem * 3 // 4))

    agg = functools.partial(_agg_kernel, tm=tm, resident=resident)
    out_pad = pl.pallas_call(
        agg,
        out_shape=jax.ShapeDtypeStruct((n_pad, c_pad), jnp.float32),
        grid_spec=pltpu.PrefetchScalarGridSpec(
            num_scalar_prefetch=0,
            grid=(n_tiles, n_tiles),
            in_specs=[
                pl.BlockSpec((tm, tm), lambda i, k: (i, k)),  # A_hat tile (bf16)
                xw_spec,                                      # xw (resident or k-block)
                pl.BlockSpec((tm, 1), lambda i, k: (i, 0)),   # d^-1/2 row block
            ],
            out_specs=pl.BlockSpec((tm, c_pad), lambda i, k: (i, 0)),
            scratch_shapes=[pltpu.VMEM((tm, c_pad), jnp.float32)],
        ),
        compiler_params=pltpu.CompilerParams(
            dimension_semantics=("parallel", "arbitrary"),
            vmem_limit_bytes=vmem_limit),
        cost_estimate=pl.CostEstimate(
            flops=2 * n_pad * n_pad * c_pad,
            transcendentals=0,
            bytes_accessed=(n_pad * n_pad * 2     # A_hat (bf16), dominant stream
                            + xw_read_bytes       # xw_scaled (bf16)
                            + n_pad * c_pad * 4   # output (f32)
                            + n_pad * 4),         # d^-1/2
        ),
    )(a_hat, xw_scaled, d_inv_sqrt)

    return out_pad[:n, :c_out]


if __name__ == "__main__":
    key = jax.random.PRNGKey(0)
    k_x, k_theta, k_edges = jax.random.split(key, 3)

    N = 8            # number of nodes
    C_IN = 16        # in_channels
    C_OUT = 32       # out_channels
    E = 12           # number of edges

    # Node features.
    x = jax.random.normal(k_x, (N, C_IN), dtype=jnp.float32)

    # Parameter init matching the PyTorch module:
    # theta ~ U(-1/sqrt(out_channels), 1/sqrt(out_channels)).
    stdv = 1.0 / math.sqrt(C_OUT)
    theta = jax.random.uniform(k_theta, (C_IN, C_OUT),
                               minval=-stdv, maxval=stdv, dtype=jnp.float32)

    # Random edge list (2, E).
    edge_index = jax.random.randint(k_edges, (2, E), 0, N, dtype=jnp.int32)

    out = gcn_conv(x, edge_index, theta)
    jax.block_until_ready(out)

    # Reference check in plain JAX (same math as the PyTorch forward).
    a_ref = jnp.zeros((N, N), jnp.float32).at[edge_index[0], edge_index[1]].set(1.0)
    a_p = a_ref + jnp.eye(N, dtype=jnp.float32)
    d_inv_sqrt = 1.0 / jnp.sqrt(jnp.sum(a_p, axis=-1))
    ret_a = (d_inv_sqrt[:, None] * a_p) * d_inv_sqrt[None, :]
    ref = ret_a @ (x @ theta)

    # bf16 MXU operands (A_hat, X, Theta, xw) => ~1e-2 relative accuracy.
    assert jnp.allclose(out, ref, atol=3e-2, rtol=3e-2), "mismatch vs reference"

    print("KERNEL_OK")
</pallas_src>

<mosaic_0001>
module attributes {stable_mosaic.version = 11 : i64} {
  func.func @_xw_scale_kernel(%arg0: i32, %arg1: memref<128x16xbf16, #tpu.memory_space<vmem>>, %arg2: memref<16x128xbf16, #tpu.memory_space<vmem>>, %arg3: memref<128x1xf32, #tpu.memory_space<vmem>>, %arg4: memref<128x128xbf16, #tpu.memory_space<vmem>>) attributes {dimension_semantics = [#tpu.dimension_semantics<parallel>], iteration_bounds = array<i64: 1>, scalar_prefetch = 0 : i64, scratch_operands = 0 : i64, tpu.core_type = #tpu.core_type<tc>, window_params = [{transform_indices = @transform_0, window_bounds = array<i64: 128, 16>}, {pipeline_mode = #tpu.pipeline_mode<synchronous>, transform_indices = @transform_1, window_bounds = array<i64: 16, 128>}, {transform_indices = @transform_2, window_bounds = array<i64: 128, 1>}, {transform_indices = @transform_3, window_bounds = array<i64: 128, 128>}]} {
    %c0 = arith.constant 0 : index
    %c0_0 = arith.constant 0 : index
    %0 = vector.load %arg1[%c0, %c0_0] : memref<128x16xbf16, #tpu.memory_space<vmem>>, vector<128x16xbf16>
    %c0_1 = arith.constant 0 : index
    %c0_2 = arith.constant 0 : index
    %1 = vector.load %arg2[%c0_1, %c0_2] : memref<16x128xbf16, #tpu.memory_space<vmem>>, vector<16x128xbf16>
    %cst = arith.constant dense<0.000000e+00> : vector<128x128xf32>
    %2 = tpu.matmul %0, %1, %cst {dimension_numbers = #tpu.dot_dimension_numbers<[1], [0], [0], [1], [0, 0, 1, 1], [], []>} : vector<128x16xbf16>, vector<16x128xbf16>, vector<128x128xf32> -> vector<128x128xf32>
    %c0_3 = arith.constant 0 : index
    %c0_4 = arith.constant 0 : index
    %3 = vector.load %arg3[%c0_3, %c0_4] : memref<128x1xf32, #tpu.memory_space<vmem>>, vector<128x1xf32>
    %4 = vector.broadcast %3 : vector<128x1xf32> to vector<128x128xf32>
    %5 = arith.mulf %4, %2 : vector<128x128xf32>
    %6 = arith.truncf %5 : vector<128x128xf32> to vector<128x128xbf16>
    %c0_5 = arith.constant 0 : index
    %c0_6 = arith.constant 0 : index
    %7 = vector.load %arg4[%c0_5, %c0_6] : memref<128x128xbf16, #tpu.memory_space<vmem>>, vector<128x128xbf16>
    tpu.vector_store %arg4[%c0_5, %c0_6], %6 {strides = array<i32>} : memref<128x128xbf16, #tpu.memory_space<vmem>>, vector<128x128xbf16>,
    return
  }
  func.func @transform_0(%arg0: i32) -> (i32, i32) {
    %c0_i32 = arith.constant 0 : i32
    %c0_i32_0 = arith.constant 0 : i32
    return %arg0, %c0_i32 : i32, i32
  }
  func.func @transform_1(%arg0: i32) -> (i32, i32) {
    %c0_i32 = arith.constant 0 : i32
    %c0_i32_0 = arith.constant 0 : i32
    %c0_i32_1 = arith.constant 0 : i32
    return %c0_i32, %c0_i32_0 : i32, i32
  }
  func.func @transform_2(%arg0: i32) -> (i32, i32) {
    %c0_i32 = arith.constant 0 : i32
    %c0_i32_0 = arith.constant 0 : i32
    return %arg0, %c0_i32 : i32, i32
  }
  func.func @transform_3(%arg0: i32) -> (i32, i32) {
    %c0_i32 = arith.constant 0 : i32
    %c0_i32_0 = arith.constant 0 : i32
    return %arg0, %c0_i32 : i32, i32
  }
}

</mosaic_0001>

<llo_original>
// kernel: tpu_custom_call.1
$region0: #{tpu_custom_call.1}
  #allocation0 [shape = 'u32[]', space=smem, size = 0x4, offset = 0x4, fixed_abs, tag = 'smem constant byte address 0x4 - core index']
  #allocation1 [shape = 'u32[144,128]{1,0:T(1,128)}', space=vmem, size = 0x12000, scoped, tag = 'internal scratch']
  %s0 = inlined_call_operand.vmem [shape: bf16[128,16], index: 0, kind: input, shape index: {}]
  %s1 = inlined_call_operand.vmem [shape: bf16[16,128], index: 1, kind: input, shape index: {}]
  %s2 = inlined_call_operand.vmem [shape: f32[128,1], index: 2, kind: input, shape index: {}]
  %s3 = inlined_call_operand.hbm [shape: bf16[128,128], index: 3, kind: output, shape index: {}]
  %s4 = sld [smem:[#allocation0]]
  $region22: #{tpu_custom_call.1} parent=0
    _
  %s6 = ssub.s32 1, %s4
  %s7 = scalar_select 0, %s6, %s4
  $region1: #{tpu_custom_call.1} parent=0
    #allocation2 [shape = 'u8[32768]{0}', space=vmem, size = 0x8000, scoped, tag = 'output window, operand 0, single buffered']
    #allocation3 [shape = 's32[1]{0}', space=sflag, size = 0x4, scoped, tag = 'scoped memory for tpu_custom_call.1']
    %8 = vsyncpa [#allocation3], 0
    // Predicated region
    $region2: #{tpu_custom_call.1} parent=1 // pred_check
      _
    $region3: #{tpu_custom_call.1} parent=1 // pred_check_branch
      %10 = sbr.rel (0) target = $region5
    $region4: #{tpu_custom_call.1} parent=1 // pred_region
      _
    $region5: #{tpu_custom_call.1} parent=1 // pred_fallthru
      _
    // Predicated region
    $region6: #{tpu_custom_call.1} parent=1 // pred_check
      _
    $region7: #{tpu_custom_call.1} parent=1 // pred_check_branch
      %12 = sbr.rel (0) target = $region9
    $region8: #{tpu_custom_call.1} parent=1 // pred_region
      _
    $region9: #{tpu_custom_call.1} parent=1 // pred_fallthru
      _
    // Predicated region
    $region10: #{tpu_custom_call.1} parent=1 // pred_check
      _
    $region11: #{tpu_custom_call.1} parent=1 // pred_check_branch
      %14 = sbr.rel (0) target = $region13
    $region12: #{tpu_custom_call.1} parent=1 // pred_region
      _
    $region13: #{tpu_custom_call.1} parent=1 // pred_fallthru
      _
    %v16 = vld [vmem:[%s0] sm:$0xf]
    %v17 = vld [vmem:[%s0 + $0x4] sm:$0xf]
    %v18 = vld [vmem:[%s0 + $0x8] sm:$0xf]
    %v19 = vld [vmem:[%s0 + $0xc] sm:$0xf]
    %v20 = vld [vmem:[%s0 + $0x10] sm:$0xf]
    %v21 = vld [vmem:[%s0 + $0x14] sm:$0xf]
    %v22 = vld [vmem:[%s0 + $0x18] sm:$0xf]
    %v23 = vld [vmem:[%s0 + $0x1c] sm:$0xf]
    %v24 = vld [vmem:[%s0 + $0x20] sm:$0xf]
    %v25 = vld [vmem:[%s0 + $0x24] sm:$0xf]
    %v26 = vld [vmem:[%s0 + $0x28] sm:$0xf]
    %v27 = vld [vmem:[%s0 + $0x2c] sm:$0xf]
    %v28 = vld [vmem:[%s0 + $0x30] sm:$0xf]
    %v29 = vld [vmem:[%s0 + $0x34] sm:$0xf]
    %v30 = vld [vmem:[%s0 + $0x38] sm:$0xf]
    %v31 = vld [vmem:[%s0 + $0x3c] sm:$0xf]
    %v32 = vld [vmem:[%s1] sm:$0xf]
    %v33 = vld [vmem:[%s1 + $0x4] sm:$0xf]
    %v50 = vunpack.c.l.b16 %v16
    %v51 = vunpack.c.l.b16 %v17
    %v52 = vunpack.c.l.b16 %v18
    %v53 = vunpack.c.l.b16 %v19
    %v54 = vunpack.c.l.b16 %v20
    %v55 = vunpack.c.l.b16 %v21
    %v56 = vunpack.c.l.b16 %v22
    %v57 = vunpack.c.l.b16 %v23
    %v58 = vunpack.c.l.b16 %v24
    %v59 = vunpack.c.l.b16 %v25
    %v60 = vunpack.c.l.b16 %v26
    %v61 = vunpack.c.l.b16 %v27
    %v62 = vunpack.c.l.b16 %v28
    %v63 = vunpack.c.l.b16 %v29
    %v64 = vunpack.c.l.b16 %v30
    %v65 = vunpack.c.l.b16 %v31
    %v66 = vpack.c.b16 %v51, %v50
    %v67 = vpack.c.b16 %v53, %v52
    %v68 = vpack.c.b16 %v55, %v54
    %v69 = vpack.c.b16 %v57, %v56
    %v70 = vpack.c.b16 %v59, %v58
    %v71 = vpack.c.b16 %v61, %v60
    %v72 = vpack.c.b16 %v63, %v62
    %v73 = vpack.c.b16 %v65, %v64
    %v76 = vunpack.c.l.b16 %v32
    %v77 = vunpack.c.l.b16 %v33
    %v78 = vpack.c.b16 %v77, %v76
    %vm80 = vcmask 130048
    %v82 = vsel %vm80, %v66, 0
    %v85 = vsel %vm80, %v67, 0
    %v88 = vsel %vm80, %v68, 0
    %v91 = vsel %vm80, %v69, 0
    %v94 = vsel %vm80, %v70, 0
    %v97 = vsel %vm80, %v71, 0
    %v100 = vsel %vm80, %v72, 0
    %v103 = vsel %vm80, %v73, 0
    %105 = vmatprep.subr.bf16.mxu0 0
    %106 = vmatpush1.bf16.msra.mxu0 0
    %107 = vmatprep.subr.bf16.mxu0 0
    %108 = vmatpush1.bf16.msra.mxu0 0
    %109 = vmatprep.subr.bf16.mxu0 0
    %110 = vmatpush1.bf16.msra.mxu0 0
    %111 = vmatprep.subr.bf16.mxu0 0
    %112 = vmatpush1.bf16.msra.mxu0 0
    %113 = vmatprep.subr.bf16.mxu0 0
    %114 = vmatpush1.bf16.msra.mxu0 0
    %115 = vmatprep.subr.bf16.mxu0 0
    %116 = vmatpush1.bf16.msra.mxu0 0
    %117 = vmatprep.subr.bf16.mxu0 0
    %118 = vmatpush1.bf16.msra.mxu0 0
    %119 = vmatprep.subr.bf16.mxu0 0
    %120 = vmatpush1.bf16.msra.mxu0 %v78
    %121 = vmatprep.subr.bf16.mxu0 0
    %122 = vmatpush2.bf16.msra.mxu0 0
    %123 = vmatprep.subr.bf16.mxu0 0
    %124 = vmatpush2.bf16.msra.mxu0 0
    %125 = vmatprep.subr.bf16.mxu0 0
    %126 = vmatpush2.bf16.msra.mxu0 0
    %127 = vmatprep.subr.bf16.mxu0 0
    %128 = vmatpush2.bf16.msra.mxu0 0
    %129 = vmatprep.subr.bf16.mxu0 0
    %130 = vmatpush2.bf16.msra.mxu0 0
    %131 = vmatprep.subr.bf16.mxu0 0
    %132 = vmatpush2.bf16.msra.mxu0 0
    %133 = vmatprep.subr.bf16.mxu0 0
    %134 = vmatpush2.bf16.msra.mxu0 0
    %135 = vmatprep.subr.bf16.mxu0 0
    %136 = vmatpush2.bf16.msra.mxu0 0
    %137 = vmatprep.mubr.bf16.mxu0 0
    %138 = vmatmul.mubr.bf16.gmra.mxu0 %v82
    %v139 = vpop.f32.mrf.mxu0
    %v140 = vadd.f32 0.0, %v139
    %v141 = vpop.f32.mrf.mxu0
    %v142 = vpop.f32.mrf.mxu0
    %v143 = vadd.f32 0.0, %v142
    %v144 = vpop.f32.mrf.mxu0
    %145 = vmatprep.mubr.bf16.mxu0 0
    %146 = vmatmul.mubr.bf16.gmra.mxu0 %v85
    %v147 = vpop.f32.mrf.mxu0
    %v148 = vadd.f32 0.0, %v147
    %v149 = vpop.f32.mrf.mxu0
    %v150 = vpop.f32.mrf.mxu0
    %v151 = vadd.f32 0.0, %v150
    %v152 = vpop.f32.mrf.mxu0
    %153 = vmatprep.mubr.bf16.mxu0 0
    %154 = vmatmul.mubr.bf16.gmra.mxu0 %v88
    %v155 = vpop.f32.mrf.mxu0
    %v156 = vadd.f32 0.0, %v155
    %v157 = vpop.f32.mrf.mxu0
    %v158 = vpop.f32.mrf.mxu0
    %v159 = vadd.f32 0.0, %v158
    %v160 = vpop.f32.mrf.mxu0
    %161 = vmatprep.mubr.bf16.mxu0 0
    %162 = vmatmul.mubr.bf16.gmra.mxu0 %v91
    %v163 = vpop.f32.mrf.mxu0
    %v164 = vadd.f32 0.0, %v163
    %v165 = vpop.f32.mrf.mxu0
    %v166 = vpop.f32.mrf.mxu0
    %v167 = vadd.f32 0.0, %v166
    %v168 = vpop.f32.mrf.mxu0
    %169 = vmatprep.mubr.bf16.mxu0 0
    %170 = vmatmul.mubr.bf16.gmra.mxu0 %v94
    %v171 = vpop.f32.mrf.mxu0
    %v172 = vadd.f32 0.0, %v171
    %v173 = vpop.f32.mrf.mxu0
    %v174 = vpop.f32.mrf.mxu0
    %v175 = vadd.f32 0.0, %v174
    %v176 = vpop.f32.mrf.mxu0
    %177 = vmatprep.mubr.bf16.mxu0 0
    %178 = vmatmul.mubr.bf16.gmra.mxu0 %v97
    %v179 = vpop.f32.mrf.mxu0
    %v180 = vadd.f32 0.0, %v179
    %v181 = vpop.f32.mrf.mxu0
    %v182 = vpop.f32.mrf.mxu0
    %v183 = vadd.f32 0.0, %v182
    %v184 = vpop.f32.mrf.mxu0
    %185 = vmatprep.mubr.bf16.mxu0 0
    %186 = vmatmul.mubr.bf16.gmra.mxu0 %v100
    %v187 = vpop.f32.mrf.mxu0
    %v188 = vadd.f32 0.0, %v187
    %v189 = vpop.f32.mrf.mxu0
    %v190 = vpop.f32.mrf.mxu0
    %v191 = vadd.f32 0.0, %v190
    %v192 = vpop.f32.mrf.mxu0
    %193 = vmatprep.mubr.bf16.mxu0 0
    %194 = vmatmul.mubr.bf16.gmra.mxu0 %v103
    %v195 = vpop.f32.mrf.mxu0
    %v196 = vadd.f32 0.0, %v195
    %v197 = vpop.f32.mrf.mxu0
    %v198 = vpop.f32.mrf.mxu0
    %v199 = vadd.f32 0.0, %v198
    %v200 = vpop.f32.mrf.mxu0
    %201 = vdwg.mxu0
    %v202 = vld [vmem:[%s2] sm:$0xff]
    %v203 = vld [vmem:[%s2 + $0x8] sm:$0xff]
    %v204 = vld [vmem:[%s2 + $0x10] sm:$0xff]
    %v205 = vld [vmem:[%s2 + $0x18] sm:$0xff]
    %v206 = vld [vmem:[%s2 + $0x20] sm:$0xff]
    %v207 = vld [vmem:[%s2 + $0x28] sm:$0xff]
    %v208 = vld [vmem:[%s2 + $0x30] sm:$0xff]
    %v209 = vld [vmem:[%s2 + $0x38] sm:$0xff]
    %v210 = vld [vmem:[%s2 + $0x40] sm:$0xff]
    %v211 = vld [vmem:[%s2 + $0x48] sm:$0xff]
    %v212 = vld [vmem:[%s2 + $0x50] sm:$0xff]
    %v213 = vld [vmem:[%s2 + $0x58] sm:$0xff]
    %v214 = vld [vmem:[%s2 + $0x60] sm:$0xff]
    %v215 = vld [vmem:[%s2 + $0x68] sm:$0xff]
    %v216 = vld [vmem:[%s2 + $0x70] sm:$0xff]
    %v217 = vld [vmem:[%s2 + $0x78] sm:$0xff]
    %219 = vset.pattern.permute.xlu0 0
    %220 = vperm.xlu0 %219, %v202
    %v221 = vpop.permute.xlu0 %220
    %224 = vset.pattern.permute.xlu0 0
    %225 = vperm.xlu0 %224, %v203
    %v226 = vpop.permute.xlu0 %225
    %229 = vset.pattern.permute.xlu0 0
    %230 = vperm.xlu0 %229, %v204
    %v231 = vpop.permute.xlu0 %230
    %234 = vset.pattern.permute.xlu0 0
    %235 = vperm.xlu0 %234, %v205
    %v236 = vpop.permute.xlu0 %235
    %239 = vset.pattern.permute.xlu0 0
    %240 = vperm.xlu0 %239, %v206
    %v241 = vpop.permute.xlu0 %240
    %244 = vset.pattern.permute.xlu0 0
    %245 = vperm.xlu0 %244, %v207
    %v246 = vpop.permute.xlu0 %245
    %249 = vset.pattern.permute.xlu0 0
    %250 = vperm.xlu0 %249, %v208
    %v251 = vpop.permute.xlu0 %250
    %254 = vset.pattern.permute.xlu0 0
    %255 = vperm.xlu0 %254, %v209
    %v256 = vpop.permute.xlu0 %255
    %259 = vset.pattern.permute.xlu0 0
    %260 = vperm.xlu0 %259, %v210
    %v261 = vpop.permute.xlu0 %260
    %264 = vset.pattern.permute.xlu0 0
    %265 = vperm.xlu0 %264, %v211
    %v266 = vpop.permute.xlu0 %265
    %269 = vset.pattern.permute.xlu0 0
    %270 = vperm.xlu0 %269, %v212
    %v271 = vpop.permute.xlu0 %270
    %274 = vset.pattern.permute.xlu0 0
    %275 = vperm.xlu0 %274, %v213
    %v276 = vpop.permute.xlu0 %275
    %279 = vset.pattern.permute.xlu0 0
    %280 = vperm.xlu0 %279, %v214
    %v281 = vpop.permute.xlu0 %280
    %284 = vset.pattern.permute.xlu0 0
    %285 = vperm.xlu0 %284, %v215
    %v286 = vpop.permute.xlu0 %285
    %289 = vset.pattern.permute.xlu0 0
    %290 = vperm.xlu0 %289, %v216
    %v291 = vpop.permute.xlu0 %290
    %294 = vset.pattern.permute.xlu0 0
    %295 = vperm.xlu0 %294, %v217
    %v296 = vpop.permute.xlu0 %295
    %v298 = vmul.f32 %v221, %v140
    %v299 = vmul.f32 %v226, %v143
    %v300 = vmul.f32 %v231, %v148
    %v301 = vmul.f32 %v236, %v151
    %v302 = vmul.f32 %v241, %v156
    %v303 = vmul.f32 %v246, %v159
    %v304 = vmul.f32 %v251, %v164
    %v305 = vmul.f32 %v256, %v167
    %v306 = vmul.f32 %v261, %v172
    %v307 = vmul.f32 %v266, %v175
    %v308 = vmul.f32 %v271, %v180
    %v309 = vmul.f32 %v276, %v183
    %v310 = vmul.f32 %v281, %v188
    %v311 = vmul.f32 %v286, %v191
    %v312 = vmul.f32 %v291, %v196
    %v313 = vmul.f32 %v296, %v199
    %v314 = vpack.c.bf16 %v299, %v298
    %v315 = vpack.c.bf16 %v301, %v300
    %v316 = vpack.c.bf16 %v303, %v302
    %v317 = vpack.c.bf16 %v305, %v304
    %v318 = vpack.c.bf16 %v307, %v306
    %v319 = vpack.c.bf16 %v309, %v308
    %v320 = vpack.c.bf16 %v311, %v310
    %v321 = vpack.c.bf16 %v313, %v312
    %v330 = vunpack.c.l.b16 %v314
    %v331 = vunpack.c.h.b16 %v314
    %v332 = vunpack.c.l.b16 %v315
    %v333 = vunpack.c.h.b16 %v315
    %v334 = vunpack.c.l.b16 %v316
    %v335 = vunpack.c.h.b16 %v316
    %v336 = vunpack.c.l.b16 %v317
    %v337 = vunpack.c.h.b16 %v317
    %v338 = vunpack.c.l.b16 %v318
    %v339 = vunpack.c.h.b16 %v318
    %v340 = vunpack.c.l.b16 %v319
    %v341 = vunpack.c.h.b16 %v319
    %v342 = vunpack.c.l.b16 %v320
    %v343 = vunpack.c.h.b16 %v320
    %v344 = vunpack.c.l.b16 %v321
    %v345 = vunpack.c.h.b16 %v321
    %v346 = vpack.c.b16 %v330, %v330
    %v347 = vpack.c.b16 %v331, %v331
    %v348 = vpack.c.b16 %v332, %v332
    %v349 = vpack.c.b16 %v333, %v333
    %v350 = vpack.c.b16 %v334, %v334
    %v351 = vpack.c.b16 %v335, %v335
    %v352 = vpack.c.b16 %v336, %v336
    %v353 = vpack.c.b16 %v337, %v337
    %v354 = vpack.c.b16 %v338, %v338
    %v355 = vpack.c.b16 %v339, %v339
    %v356 = vpack.c.b16 %v340, %v340
    %v357 = vpack.c.b16 %v341, %v341
    %v358 = vpack.c.b16 %v342, %v342
    %v359 = vpack.c.b16 %v343, %v343
    %v360 = vpack.c.b16 %v344, %v344
    %v361 = vpack.c.b16 %v345, %v345
    %378 = vst [vmem:[#allocation2] sm:$0xf] %v346
    %379 = vst [vmem:[#allocation2 + $0x4] sm:$0xf] %v347
    %380 = vst [vmem:[#allocation2 + $0x8] sm:$0xf] %v348
    %381 = vst [vmem:[#allocation2 + $0xc] sm:$0xf] %v349
    %382 = vst [vmem:[#allocation2 + $0x10] sm:$0xf] %v350
    %383 = vst [vmem:[#allocation2 + $0x14] sm:$0xf] %v351
    %384 = vst [vmem:[#allocation2 + $0x18] sm:$0xf] %v352
    %385 = vst [vmem:[#allocation2 + $0x1c] sm:$0xf] %v353
    %386 = vst [vmem:[#allocation2 + $0x20] sm:$0xf] %v354
    %387 = vst [vmem:[#allocation2 + $0x24] sm:$0xf] %v355
    %388 = vst [vmem:[#allocation2 + $0x28] sm:$0xf] %v356
    %389 = vst [vmem:[#allocation2 + $0x2c] sm:$0xf] %v357
    %390 = vst [vmem:[#allocation2 + $0x30] sm:$0xf] %v358
    %391 = vst [vmem:[#allocation2 + $0x34] sm:$0xf] %v359
    %392 = vst [vmem:[#allocation2 + $0x38] sm:$0xf] %v360
    %393 = vst [vmem:[#allocation2 + $0x3c] sm:$0xf] %v361
    // Predicated region
    $region14: #{tpu_custom_call.1} parent=1 // pred_check
      _
    $region15: #{tpu_custom_call.1} parent=1 // pred_check_branch
      %395 = sbr.rel (0) target = $region17
    $region16: #{tpu_custom_call.1} parent=1 // pred_region
      %s397 = ssub.s32 1024, 1024
      %398 = vsyncadd [#allocation3], %s397
      %s399 = sshll.u32 [#allocation2], 4
      %s400 = int_to_ptr.vmem [resolvable:$true] %s399
      %405 = dma.vmem_to_hbm [thread:$0]  %s400, 1024, %s3, [#allocation3], 64, 64, 4
    $region17: #{tpu_custom_call.1} parent=1 // pred_fallthru
      _
    // Predicated region
    $region18: #{tpu_custom_call.1} parent=1 // pred_check
      _
    $region19: #{tpu_custom_call.1} parent=1 // pred_check_branch
      %407 = sbr.rel (0) target = $region21
    $region20: #{tpu_custom_call.1} parent=1 // pred_region
      %408 = dma.done [#allocation3], 1024
    $region21: #{tpu_custom_call.1} parent=1 // pred_fallthru
      _
    %409 = vsyncpa [#allocation3], 1

</llo_original>
